<compile_context>
chip_gen: v5e
topology: v5e:2x2
jax: 0.10.0
libtpu: 0.0.40
codegen_flags: <defaults>
</compile_context>

<pallas_src>
import math

import jax
import jax.numpy as jnp
import numpy as np
from jax.experimental import pallas as pl
from jax.experimental.pallas import tpu as pltpu  # noqa: F401  (TPU backend assumed)

# ---------------- model hyper-parameters (small, consistent with the module) ---------
BATCH = 2
SEQ = 8
EMBED = 32
NUM_HEADS = 4
HEAD = EMBED // NUM_HEADS
EXPANSION = 4
HIDDEN = EMBED * EXPANSION
EPS = 1e-5


# ---------------- Pallas kernel: full encoder block, all batches, one invocation -----
def encoder_block_kernel(
    x_ref,        # (B, S, E)
    vecs_ref,     # (8, E)  rows: 0 ln1_g, 1 ln1_b, 2 ln2_g, 3 ln2_b, 4 b2, 5-7 pad
    slab_ref,     # (E, 4E) pre-transposed fused [Wq.T/sqrt(hd) | Wk.T | Wv.T | Wo.T]
    w1_t_ref,     # (E, HIDDEN)
    b1_ref,       # (1, HIDDEN)
    w2_t_ref,     # (HIDDEN, E)
    o_ref,        # (B, S, E)
):
    B, S, E = x_ref.shape
    BS = B * S

    # Leading-dim merge (B,S,E)->(B*S,E): layout-preserving, no lane movement.
    x = x_ref[...].astype(jnp.float32).reshape(BS, E)

    vecs = vecs_ref[...]
    ln1_g, ln1_b = vecs[0:1, :], vecs[1:2, :]
    ln2_g, ln2_b = vecs[2:3, :], vecs[3:4, :]
    b2 = vecs[4:5, :]

    def layernorm(v, g, b):
        mu = jnp.mean(v, axis=-1, keepdims=True)
        var = jnp.mean((v - mu) ** 2, axis=-1, keepdims=True)
        return (v - mu) * jax.lax.rsqrt(var + EPS) * g + b

    # ---- FirstNormalization ----
    xn = layernorm(x, ln1_g, ln1_b)

    # ---- fused Q/K/V projection: one MXU matmul (no bias, per PyTorch module) ----
    slab = slab_ref[...]                                   # (E, 4E) lane-dense
    qkv = jnp.dot(xn, slab[:, : 3 * E],
                  preferred_element_type=jnp.float32)      # (BS, 3E)
    wo_t = slab[:, 3 * E:]                                 # (E, E) static lane slice

    # ---- multi-head self attention (scale already folded into Wq columns) ----
    ctx_heads = []
    for h in range(NUM_HEADS):                 # static unroll over 4 heads
        lo = h * HEAD
        # static lane slices of the fused projection; leading split (BS,)->(B,S) is free
        qh = qkv[:, lo:lo + HEAD].reshape(B, S, HEAD)
        kh = qkv[:, E + lo:E + lo + HEAD].reshape(B, S, HEAD)
        vh = qkv[:, 2 * E + lo:2 * E + lo + HEAD].reshape(B, S, HEAD)

        scores = jnp.einsum('bqd,bkd->bqk', qh, kh,
                            preferred_element_type=jnp.float32)          # (B,S,S)
        m = jnp.max(scores, axis=-1, keepdims=True)
        e = jnp.exp(scores - m)
        denom = jnp.sum(e, axis=-1, keepdims=True)                        # (B,S,1)
        ctx = jnp.einsum('bqk,bkd->bqd', e, vh,
                         preferred_element_type=jnp.float32) / denom      # exact divide
        ctx_heads.append(ctx.reshape(BS, HEAD))

    # lane concat of the 4 head contexts (XLU has slack), then ONE Wo matmul
    ctx_cat = jnp.concatenate(ctx_heads, axis=-1)                         # (BS, E)
    attn = jnp.dot(ctx_cat, wo_t, preferred_element_type=jnp.float32)     # (BS, E)

    # ---- first residual ----
    y1 = x + attn

    # ---- SecondNormalization + feed-forward ----
    y1n = layernorm(y1, ln2_g, ln2_b)
    ff = jnp.dot(y1n, w1_t_ref[...], preferred_element_type=jnp.float32) + b1_ref[...]
    ff = jnp.maximum(ff, 0.0)                                             # ReLU
    ff = jnp.dot(ff, w2_t_ref[...], preferred_element_type=jnp.float32) + b2

    # ---- second residual ----
    o_ref[...] = (y1 + ff).reshape(B, S, E).astype(o_ref.dtype)


# ---------------- wrapper -------------------------------------------------------------
@jax.jit
def encoder_unit_block(x, params):
    B, S, E = x.shape
    inv_sqrt_hd = 1.0 / math.sqrt(HEAD)

    # Weight prep outside the kernel (plain XLA, one-time per call; in production
    # these would be folded into the stored parameters):
    #   * single (E, 4E)=(32,128) lane-dense slab: [Wq.T * 1/sqrt(hd) | Wk.T | Wv.T | Wo.T]
    #   * five (1,E) vector params packed into one (8,E) array (rows 5-7 zero pad)
    slab = jnp.concatenate(
        [params["wq"].T * inv_sqrt_hd, params["wk"].T, params["wv"].T, params["wo"].T],
        axis=1)                                                      # (E, 4E)
    vecs = jnp.concatenate(
        [params["ln1_g"], params["ln1_b"], params["ln2_g"], params["ln2_b"],
         params["b2"], jnp.zeros((3, E), jnp.float32)], axis=0)      # (8, E)
    w1_t = params["w1"].T                                            # (E, HIDDEN)
    w2_t = params["w2"].T                                            # (HIDDEN, E)

    flops = 2 * B * S * (3 * E * E            # fused QKV projection
                         + E * E              # output projection
                         + 2 * S * E          # scores + p@v
                         + 2 * E * HIDDEN)    # feed-forward
    transcendentals = B * NUM_HEADS * S * S + 2 * B * S
    bytes_accessed = 4 * (2 * B * S * E                      # x in + out
                          + 4 * E * E + 2 * E * HIDDEN       # weights
                          + 8 * E + HIDDEN)                  # packed vecs + b1

    # No grid / no BlockSpecs: single kernel invocation, every operand is one
    # whole-array VMEM block (total footprint ~80 KB, trivially fits any TPU gen,
    # including v7x's 64 MiB VMEM).
    return pl.pallas_call(
        encoder_block_kernel,
        out_shape=jax.ShapeDtypeStruct((B, S, E), x.dtype),
        cost_estimate=pl.CostEstimate(
            flops=flops,
            transcendentals=transcendentals,
            bytes_accessed=bytes_accessed,
        ),
    )(x, vecs, slab, w1_t, params["b1"], w2_t)


# ---------------- pure-JAX reference (correctness check) ------------------------------
def reference(x, p):
    def ln(v, g, b):
        mu = jnp.mean(v, axis=-1, keepdims=True)
        var = jnp.mean((v - mu) ** 2, axis=-1, keepdims=True)
        return (v - mu) / jnp.sqrt(var + EPS) * g[0] + b[0]

    xn = ln(x, p["ln1_g"], p["ln1_b"])
    q = xn @ p["wq"].T
    k = xn @ p["wk"].T
    v = xn @ p["wv"].T
    B, S, E = x.shape
    qh = q.reshape(B, S, NUM_HEADS, HEAD).transpose(0, 2, 1, 3)
    kh = k.reshape(B, S, NUM_HEADS, HEAD).transpose(0, 2, 1, 3)
    vh = v.reshape(B, S, NUM_HEADS, HEAD).transpose(0, 2, 1, 3)
    scores = jnp.einsum("bhqd,bhkd->bhqk", qh, kh) / math.sqrt(HEAD)
    probs = jax.nn.softmax(scores, axis=-1)
    attn = jnp.einsum("bhqk,bhkd->bhqd", probs, vh)
    attn = attn.transpose(0, 2, 1, 3).reshape(B, S, E) @ p["wo"].T
    y1 = x + attn
    y1n = ln(y1, p["ln2_g"], p["ln2_b"])
    ff = jnp.maximum(y1n @ p["w1"].T + p["b1"][0], 0.0)
    ff = ff @ p["w2"].T + p["b2"][0]
    return y1 + ff


# ---------------- deterministic parameter init + run -----------------------------------
def make_params(key):
    ks = jax.random.split(key, 8)
    scale = 0.1
    return {
        "ln1_g": jnp.ones((1, EMBED), jnp.float32),
        "ln1_b": jnp.zeros((1, EMBED), jnp.float32),
        "wq": scale * jax.random.normal(ks[0], (EMBED, EMBED), jnp.float32),
        "wk": scale * jax.random.normal(ks[1], (EMBED, EMBED), jnp.float32),
        "wv": scale * jax.random.normal(ks[2], (EMBED, EMBED), jnp.float32),
        "wo": scale * jax.random.normal(ks[3], (EMBED, EMBED), jnp.float32),
        "ln2_g": jnp.ones((1, EMBED), jnp.float32),
        "ln2_b": jnp.zeros((1, EMBED), jnp.float32),
        "w1": scale * jax.random.normal(ks[4], (HIDDEN, EMBED), jnp.float32),
        "b1": scale * jax.random.normal(ks[5], (1, HIDDEN), jnp.float32),
        "w2": scale * jax.random.normal(ks[6], (EMBED, HIDDEN), jnp.float32),
        "b2": scale * jax.random.normal(ks[7], (1, EMBED), jnp.float32),
    }


if __name__ == "__main__":
    key = jax.random.PRNGKey(0)
    k_x, k_p = jax.random.split(key)
    x = jax.random.normal(k_x, (BATCH, SEQ, EMBED), jnp.float32)
    params = make_params(k_p)

    out = encoder_unit_block(x, params)
    out = jax.block_until_ready(out)

    ref = reference(x, params)
    # tolerance accounts for MXU accumulation-order / reduced-precision pass differences
    # vs the XLA reference (softmax divide is now exact).
    np.testing.assert_allclose(np.asarray(out), np.asarray(ref), rtol=2e-3, atol=2e-3)

    print("KERNEL_OK")
</pallas_src>

<mosaic_0001>
module attributes {stable_mosaic.version = 11 : i64} {
  func.func @encoder_block_kernel(%arg0: memref<2x8x32xf32, #tpu.memory_space<vmem>>, %arg1: memref<8x32xf32, #tpu.memory_space<vmem>>, %arg2: memref<32x128xf32, #tpu.memory_space<vmem>>, %arg3: memref<32x128xf32, #tpu.memory_space<vmem>>, %arg4: memref<1x128xf32, #tpu.memory_space<vmem>>, %arg5: memref<128x32xf32, #tpu.memory_space<vmem>>, %arg6: memref<2x8x32xf32, #tpu.memory_space<vmem>>) attributes {dimension_semantics = [], scalar_prefetch = 0 : i64, scratch_operands = 0 : i64, tpu.core_type = #tpu.core_type<tc>} {
    %c0 = arith.constant 0 : index
    %c0_0 = arith.constant 0 : index
    %c0_1 = arith.constant 0 : index
    %0 = vector.load %arg0[%c0, %c0_0, %c0_1] : memref<2x8x32xf32, #tpu.memory_space<vmem>>, vector<2x8x32xf32>
    %1 = vector.shape_cast %0 : vector<2x8x32xf32> to vector<16x32xf32>
    %c0_2 = arith.constant 0 : index
    %c0_3 = arith.constant 0 : index
    %2 = vector.load %arg1[%c0_2, %c0_3] : memref<8x32xf32, #tpu.memory_space<vmem>>, vector<8x32xf32>
    %3 = vector.extract_strided_slice %2 {offsets = [0, 0], sizes = [1, 32], strides = [1, 1]} : vector<8x32xf32> to vector<1x32xf32>
    %4 = vector.extract_strided_slice %2 {offsets = [1, 0], sizes = [1, 32], strides = [1, 1]} : vector<8x32xf32> to vector<1x32xf32>
    %5 = vector.extract_strided_slice %2 {offsets = [2, 0], sizes = [1, 32], strides = [1, 1]} : vector<8x32xf32> to vector<1x32xf32>
    %6 = vector.extract_strided_slice %2 {offsets = [3, 0], sizes = [1, 32], strides = [1, 1]} : vector<8x32xf32> to vector<1x32xf32>
    %7 = vector.extract_strided_slice %2 {offsets = [4, 0], sizes = [1, 32], strides = [1, 1]} : vector<8x32xf32> to vector<1x32xf32>
    %cst = arith.constant dense<0.000000e+00> : vector<16xf32>
    %8 = vector.multi_reduction <add>, %1, %cst [1] : vector<16x32xf32> to vector<16xf32>
    %9 = vector.shape_cast %8 : vector<16xf32> to vector<16x1xf32>
    %cst_4 = arith.constant 3.200000e+01 : f32
    %10 = vector.broadcast %cst_4 : f32 to vector<16x1xf32>
    %11 = arith.divf %9, %10 : vector<16x1xf32>
    %12 = vector.broadcast %11 : vector<16x1xf32> to vector<16x32xf32>
    %13 = arith.subf %1, %12 : vector<16x32xf32>
    %14 = arith.mulf %13, %13 : vector<16x32xf32>
    %cst_5 = arith.constant dense<0.000000e+00> : vector<16xf32>
    %15 = vector.multi_reduction <add>, %14, %cst_5 [1] : vector<16x32xf32> to vector<16xf32>
    %16 = vector.shape_cast %15 : vector<16xf32> to vector<16x1xf32>
    %cst_6 = arith.constant 3.200000e+01 : f32
    %17 = vector.broadcast %cst_6 : f32 to vector<16x1xf32>
    %18 = arith.divf %16, %17 : vector<16x1xf32>
    %19 = vector.broadcast %11 : vector<16x1xf32> to vector<16x32xf32>
    %20 = arith.subf %1, %19 : vector<16x32xf32>
    %cst_7 = arith.constant 9.99999974E-6 : f32
    %21 = vector.broadcast %cst_7 : f32 to vector<16x1xf32>
    %22 = arith.addf %18, %21 : vector<16x1xf32>
    %23 = math.rsqrt %22 : vector<16x1xf32>
    %24 = vector.broadcast %23 : vector<16x1xf32> to vector<16x32xf32>
    %25 = arith.mulf %20, %24 : vector<16x32xf32>
    %26 = vector.broadcast %3 : vector<1x32xf32> to vector<16x32xf32>
    %27 = arith.mulf %25, %26 : vector<16x32xf32>
    %28 = vector.broadcast %4 : vector<1x32xf32> to vector<16x32xf32>
    %29 = arith.addf %27, %28 : vector<16x32xf32>
    %c0_8 = arith.constant 0 : index
    %c0_9 = arith.constant 0 : index
    %30 = vector.load %arg2[%c0_8, %c0_9] : memref<32x128xf32, #tpu.memory_space<vmem>>, vector<32x128xf32>
    %31 = vector.extract_strided_slice %30 {offsets = [0, 0], sizes = [32, 96], strides = [1, 1]} : vector<32x128xf32> to vector<32x96xf32>
    %cst_10 = arith.constant dense<0.000000e+00> : vector<16x96xf32>
    %32 = tpu.matmul %29, %31, %cst_10 {dimension_numbers = #tpu.dot_dimension_numbers<[1], [0], [0], [1], [0, 0, 1, 1], [], []>} : vector<16x32xf32>, vector<32x96xf32>, vector<16x96xf32> -> vector<16x96xf32>
    %33 = vector.extract_strided_slice %30 {offsets = [0, 96], sizes = [32, 32], strides = [1, 1]} : vector<32x128xf32> to vector<32x32xf32>
    %34 = vector.extract_strided_slice %32 {offsets = [0, 0], sizes = [16, 8], strides = [1, 1]} : vector<16x96xf32> to vector<16x8xf32>
    %35 = vector.shape_cast %34 : vector<16x8xf32> to vector<2x8x8xf32>
    %36 = vector.extract_strided_slice %32 {offsets = [0, 32], sizes = [16, 8], strides = [1, 1]} : vector<16x96xf32> to vector<16x8xf32>
    %37 = vector.shape_cast %36 : vector<16x8xf32> to vector<2x8x8xf32>
    %38 = vector.extract_strided_slice %32 {offsets = [0, 64], sizes = [16, 8], strides = [1, 1]} : vector<16x96xf32> to vector<16x8xf32>
    %39 = vector.shape_cast %38 : vector<16x8xf32> to vector<2x8x8xf32>
    "tpu.trace_start"() <{level = 10 : i32, message = "bqd,bkd->bqk"}> : () -> ()
    %cst_11 = arith.constant dense<0.000000e+00> : vector<2x8x8xf32>
    %40 = tpu.matmul %35, %37, %cst_11 {dimension_numbers = #tpu.dot_dimension_numbers<[2], [2], [1], [1], [0, 0, 0, 1, 1, 1], [0], [0]>} : vector<2x8x8xf32>, vector<2x8x8xf32>, vector<2x8x8xf32> -> vector<2x8x8xf32>
    "tpu.trace_stop"() : () -> ()
    %cst_12 = arith.constant dense<0xFF800000> : vector<2x8xf32>
    %41 = vector.multi_reduction <maximumf>, %40, %cst_12 [2] : vector<2x8x8xf32> to vector<2x8xf32>
    %42 = vector.shape_cast %41 : vector<2x8xf32> to vector<2x8x1xf32>
    %43 = vector.broadcast %42 : vector<2x8x1xf32> to vector<2x8x8xf32>
    %44 = arith.subf %40, %43 : vector<2x8x8xf32>
    %45 = math.exp %44 : vector<2x8x8xf32>
    %cst_13 = arith.constant dense<0.000000e+00> : vector<2x8xf32>
    %46 = vector.multi_reduction <add>, %45, %cst_13 [2] : vector<2x8x8xf32> to vector<2x8xf32>
    %47 = vector.shape_cast %46 : vector<2x8xf32> to vector<2x8x1xf32>
    "tpu.trace_start"() <{level = 10 : i32, message = "bqk,bkd->bqd"}> : () -> ()
    %cst_14 = arith.constant dense<0.000000e+00> : vector<2x8x8xf32>
    %48 = tpu.matmul %45, %39, %cst_14 {dimension_numbers = #tpu.dot_dimension_numbers<[2], [1], [1], [2], [0, 0, 0, 1, 1, 2], [0], [0]>} : vector<2x8x8xf32>, vector<2x8x8xf32>, vector<2x8x8xf32> -> vector<2x8x8xf32>
    "tpu.trace_stop"() : () -> ()
    %49 = vector.broadcast %47 : vector<2x8x1xf32> to vector<2x8x8xf32>
    %50 = arith.divf %48, %49 : vector<2x8x8xf32>
    %51 = vector.shape_cast %50 : vector<2x8x8xf32> to vector<16x8xf32>
    %52 = vector.extract_strided_slice %32 {offsets = [0, 8], sizes = [16, 8], strides = [1, 1]} : vector<16x96xf32> to vector<16x8xf32>
    %53 = vector.shape_cast %52 : vector<16x8xf32> to vector<2x8x8xf32>
    %54 = vector.extract_strided_slice %32 {offsets = [0, 40], sizes = [16, 8], strides = [1, 1]} : vector<16x96xf32> to vector<16x8xf32>
    %55 = vector.shape_cast %54 : vector<16x8xf32> to vector<2x8x8xf32>
    %56 = vector.extract_strided_slice %32 {offsets = [0, 72], sizes = [16, 8], strides = [1, 1]} : vector<16x96xf32> to vector<16x8xf32>
    %57 = vector.shape_cast %56 : vector<16x8xf32> to vector<2x8x8xf32>
    "tpu.trace_start"() <{level = 10 : i32, message = "bqd,bkd->bqk"}> : () -> ()
    %cst_15 = arith.constant dense<0.000000e+00> : vector<2x8x8xf32>
    %58 = tpu.matmul %53, %55, %cst_15 {dimension_numbers = #tpu.dot_dimension_numbers<[2], [2], [1], [1], [0, 0, 0, 1, 1, 1], [0], [0]>} : vector<2x8x8xf32>, vector<2x8x8xf32>, vector<2x8x8xf32> -> vector<2x8x8xf32>
    "tpu.trace_stop"() : () -> ()
    %cst_16 = arith.constant dense<0xFF800000> : vector<2x8xf32>
    %59 = vector.multi_reduction <maximumf>, %58, %cst_16 [2] : vector<2x8x8xf32> to vector<2x8xf32>
    %60 = vector.shape_cast %59 : vector<2x8xf32> to vector<2x8x1xf32>
    %61 = vector.broadcast %60 : vector<2x8x1xf32> to vector<2x8x8xf32>
    %62 = arith.subf %58, %61 : vector<2x8x8xf32>
    %63 = math.exp %62 : vector<2x8x8xf32>
    %cst_17 = arith.constant dense<0.000000e+00> : vector<2x8xf32>
    %64 = vector.multi_reduction <add>, %63, %cst_17 [2] : vector<2x8x8xf32> to vector<2x8xf32>
    %65 = vector.shape_cast %64 : vector<2x8xf32> to vector<2x8x1xf32>
    "tpu.trace_start"() <{level = 10 : i32, message = "bqk,bkd->bqd"}> : () -> ()
    %cst_18 = arith.constant dense<0.000000e+00> : vector<2x8x8xf32>
    %66 = tpu.matmul %63, %57, %cst_18 {dimension_numbers = #tpu.dot_dimension_numbers<[2], [1], [1], [2], [0, 0, 0, 1, 1, 2], [0], [0]>} : vector<2x8x8xf32>, vector<2x8x8xf32>, vector<2x8x8xf32> -> vector<2x8x8xf32>
    "tpu.trace_stop"() : () -> ()
    %67 = vector.broadcast %65 : vector<2x8x1xf32> to vector<2x8x8xf32>
    %68 = arith.divf %66, %67 : vector<2x8x8xf32>
    %69 = vector.shape_cast %68 : vector<2x8x8xf32> to vector<16x8xf32>
    %70 = vector.extract_strided_slice %32 {offsets = [0, 16], sizes = [16, 8], strides = [1, 1]} : vector<16x96xf32> to vector<16x8xf32>
    %71 = vector.shape_cast %70 : vector<16x8xf32> to vector<2x8x8xf32>
    %72 = vector.extract_strided_slice %32 {offsets = [0, 48], sizes = [16, 8], strides = [1, 1]} : vector<16x96xf32> to vector<16x8xf32>
    %73 = vector.shape_cast %72 : vector<16x8xf32> to vector<2x8x8xf32>
    %74 = vector.extract_strided_slice %32 {offsets = [0, 80], sizes = [16, 8], strides = [1, 1]} : vector<16x96xf32> to vector<16x8xf32>
    %75 = vector.shape_cast %74 : vector<16x8xf32> to vector<2x8x8xf32>
    "tpu.trace_start"() <{level = 10 : i32, message = "bqd,bkd->bqk"}> : () -> ()
    %cst_19 = arith.constant dense<0.000000e+00> : vector<2x8x8xf32>
    %76 = tpu.matmul %71, %73, %cst_19 {dimension_numbers = #tpu.dot_dimension_numbers<[2], [2], [1], [1], [0, 0, 0, 1, 1, 1], [0], [0]>} : vector<2x8x8xf32>, vector<2x8x8xf32>, vector<2x8x8xf32> -> vector<2x8x8xf32>
    "tpu.trace_stop"() : () -> ()
    %cst_20 = arith.constant dense<0xFF800000> : vector<2x8xf32>
    %77 = vector.multi_reduction <maximumf>, %76, %cst_20 [2] : vector<2x8x8xf32> to vector<2x8xf32>
    %78 = vector.shape_cast %77 : vector<2x8xf32> to vector<2x8x1xf32>
    %79 = vector.broadcast %78 : vector<2x8x1xf32> to vector<2x8x8xf32>
    %80 = arith.subf %76, %79 : vector<2x8x8xf32>
    %81 = math.exp %80 : vector<2x8x8xf32>
    %cst_21 = arith.constant dense<0.000000e+00> : vector<2x8xf32>
    %82 = vector.multi_reduction <add>, %81, %cst_21 [2] : vector<2x8x8xf32> to vector<2x8xf32>
    %83 = vector.shape_cast %82 : vector<2x8xf32> to vector<2x8x1xf32>
    "tpu.trace_start"() <{level = 10 : i32, message = "bqk,bkd->bqd"}> : () -> ()
    %cst_22 = arith.constant dense<0.000000e+00> : vector<2x8x8xf32>
    %84 = tpu.matmul %81, %75, %cst_22 {dimension_numbers = #tpu.dot_dimension_numbers<[2], [1], [1], [2], [0, 0, 0, 1, 1, 2], [0], [0]>} : vector<2x8x8xf32>, vector<2x8x8xf32>, vector<2x8x8xf32> -> vector<2x8x8xf32>
    "tpu.trace_stop"() : () -> ()
    %85 = vector.broadcast %83 : vector<2x8x1xf32> to vector<2x8x8xf32>
    %86 = arith.divf %84, %85 : vector<2x8x8xf32>
    %87 = vector.shape_cast %86 : vector<2x8x8xf32> to vector<16x8xf32>
    %88 = vector.extract_strided_slice %32 {offsets = [0, 24], sizes = [16, 8], strides = [1, 1]} : vector<16x96xf32> to vector<16x8xf32>
    %89 = vector.shape_cast %88 : vector<16x8xf32> to vector<2x8x8xf32>
    %90 = vector.extract_strided_slice %32 {offsets = [0, 56], sizes = [16, 8], strides = [1, 1]} : vector<16x96xf32> to vector<16x8xf32>
    %91 = vector.shape_cast %90 : vector<16x8xf32> to vector<2x8x8xf32>
    %92 = vector.extract_strided_slice %32 {offsets = [0, 88], sizes = [16, 8], strides = [1, 1]} : vector<16x96xf32> to vector<16x8xf32>
    %93 = vector.shape_cast %92 : vector<16x8xf32> to vector<2x8x8xf32>
    "tpu.trace_start"() <{level = 10 : i32, message = "bqd,bkd->bqk"}> : () -> ()
    %cst_23 = arith.constant dense<0.000000e+00> : vector<2x8x8xf32>
    %94 = tpu.matmul %89, %91, %cst_23 {dimension_numbers = #tpu.dot_dimension_numbers<[2], [2], [1], [1], [0, 0, 0, 1, 1, 1], [0], [0]>} : vector<2x8x8xf32>, vector<2x8x8xf32>, vector<2x8x8xf32> -> vector<2x8x8xf32>
    "tpu.trace_stop"() : () -> ()
    %cst_24 = arith.constant dense<0xFF800000> : vector<2x8xf32>
    %95 = vector.multi_reduction <maximumf>, %94, %cst_24 [2] : vector<2x8x8xf32> to vector<2x8xf32>
    %96 = vector.shape_cast %95 : vector<2x8xf32> to vector<2x8x1xf32>
    %97 = vector.broadcast %96 : vector<2x8x1xf32> to vector<2x8x8xf32>
    %98 = arith.subf %94, %97 : vector<2x8x8xf32>
    %99 = math.exp %98 : vector<2x8x8xf32>
    %cst_25 = arith.constant dense<0.000000e+00> : vector<2x8xf32>
    %100 = vector.multi_reduction <add>, %99, %cst_25 [2] : vector<2x8x8xf32> to vector<2x8xf32>
    %101 = vector.shape_cast %100 : vector<2x8xf32> to vector<2x8x1xf32>
    "tpu.trace_start"() <{level = 10 : i32, message = "bqk,bkd->bqd"}> : () -> ()
    %cst_26 = arith.constant dense<0.000000e+00> : vector<2x8x8xf32>
    %102 = tpu.matmul %99, %93, %cst_26 {dimension_numbers = #tpu.dot_dimension_numbers<[2], [1], [1], [2], [0, 0, 0, 1, 1, 2], [0], [0]>} : vector<2x8x8xf32>, vector<2x8x8xf32>, vector<2x8x8xf32> -> vector<2x8x8xf32>
    "tpu.trace_stop"() : () -> ()
    %103 = vector.broadcast %101 : vector<2x8x1xf32> to vector<2x8x8xf32>
    %104 = arith.divf %102, %103 : vector<2x8x8xf32>
    %105 = vector.shape_cast %104 : vector<2x8x8xf32> to vector<16x8xf32>
    %106 = tpu.concatenate %51, %69, %87, %105 in 1 : vector<16x8xf32>, vector<16x8xf32>, vector<16x8xf32>, vector<16x8xf32> -> vector<16x32xf32>
    %cst_27 = arith.constant dense<0.000000e+00> : vector<16x32xf32>
    %107 = tpu.matmul %106, %33, %cst_27 {dimension_numbers = #tpu.dot_dimension_numbers<[1], [0], [0], [1], [0, 0, 1, 1], [], []>} : vector<16x32xf32>, vector<32x32xf32>, vector<16x32xf32> -> vector<16x32xf32>
    %108 = arith.addf %1, %107 : vector<16x32xf32>
    %cst_28 = arith.constant dense<0.000000e+00> : vector<16xf32>
    %109 = vector.multi_reduction <add>, %108, %cst_28 [1] : vector<16x32xf32> to vector<16xf32>
    %110 = vector.shape_cast %109 : vector<16xf32> to vector<16x1xf32>
    %cst_29 = arith.constant 3.200000e+01 : f32
    %111 = vector.broadcast %cst_29 : f32 to vector<16x1xf32>
    %112 = arith.divf %110, %111 : vector<16x1xf32>
    %113 = vector.broadcast %112 : vector<16x1xf32> to vector<16x32xf32>
    %114 = arith.subf %108, %113 : vector<16x32xf32>
    %115 = arith.mulf %114, %114 : vector<16x32xf32>
    %cst_30 = arith.constant dense<0.000000e+00> : vector<16xf32>
    %116 = vector.multi_reduction <add>, %115, %cst_30 [1] : vector<16x32xf32> to vector<16xf32>
    %117 = vector.shape_cast %116 : vector<16xf32> to vector<16x1xf32>
    %cst_31 = arith.constant 3.200000e+01 : f32
    %118 = vector.broadcast %cst_31 : f32 to vector<16x1xf32>
    %119 = arith.divf %117, %118 : vector<16x1xf32>
    %120 = vector.broadcast %112 : vector<16x1xf32> to vector<16x32xf32>
    %121 = arith.subf %108, %120 : vector<16x32xf32>
    %cst_32 = arith.constant 9.99999974E-6 : f32
    %122 = vector.broadcast %cst_32 : f32 to vector<16x1xf32>
    %123 = arith.addf %119, %122 : vector<16x1xf32>
    %124 = math.rsqrt %123 : vector<16x1xf32>
    %125 = vector.broadcast %124 : vector<16x1xf32> to vector<16x32xf32>
    %126 = arith.mulf %121, %125 : vector<16x32xf32>
    %127 = vector.broadcast %5 : vector<1x32xf32> to vector<16x32xf32>
    %128 = arith.mulf %126, %127 : vector<16x32xf32>
    %129 = vector.broadcast %6 : vector<1x32xf32> to vector<16x32xf32>
    %130 = arith.addf %128, %129 : vector<16x32xf32>
    %c0_33 = arith.constant 0 : index
    %c0_34 = arith.constant 0 : index
    %131 = vector.load %arg3[%c0_33, %c0_34] : memref<32x128xf32, #tpu.memory_space<vmem>>, vector<32x128xf32>
    %cst_35 = arith.constant dense<0.000000e+00> : vector<16x128xf32>
    %132 = tpu.matmul %130, %131, %cst_35 {dimension_numbers = #tpu.dot_dimension_numbers<[1], [0], [0], [1], [0, 0, 1, 1], [], []>} : vector<16x32xf32>, vector<32x128xf32>, vector<16x128xf32> -> vector<16x128xf32>
    %c0_36 = arith.constant 0 : index
    %c0_37 = arith.constant 0 : index
    %133 = vector.load %arg4[%c0_36, %c0_37] : memref<1x128xf32, #tpu.memory_space<vmem>>, vector<1x128xf32>
    %134 = vector.broadcast %133 : vector<1x128xf32> to vector<16x128xf32>
    %135 = arith.addf %132, %134 : vector<16x128xf32>
    %cst_38 = arith.constant 0.000000e+00 : f32
    %136 = vector.broadcast %cst_38 : f32 to vector<16x128xf32>
    %137 = arith.maximumf %135, %136 : vector<16x128xf32>
    %c0_39 = arith.constant 0 : index
    %c0_40 = arith.constant 0 : index
    %138 = vector.load %arg5[%c0_39, %c0_40] : memref<128x32xf32, #tpu.memory_space<vmem>>, vector<128x32xf32>
    %cst_41 = arith.constant dense<0.000000e+00> : vector<16x32xf32>
    %139 = tpu.matmul %137, %138, %cst_41 {dimension_numbers = #tpu.dot_dimension_numbers<[1], [0], [0], [1], [0, 0, 1, 1], [], []>} : vector<16x128xf32>, vector<128x32xf32>, vector<16x32xf32> -> vector<16x32xf32>
    %140 = vector.broadcast %7 : vector<1x32xf32> to vector<16x32xf32>
    %141 = arith.addf %139, %140 : vector<16x32xf32>
    %142 = arith.addf %108, %141 : vector<16x32xf32>
    %143 = vector.shape_cast %142 : vector<16x32xf32> to vector<2x8x32xf32>
    %c0_42 = arith.constant 0 : index
    %c0_43 = arith.constant 0 : index
    %c0_44 = arith.constant 0 : index
    %144 = vector.load %arg6[%c0_42, %c0_43, %c0_44] : memref<2x8x32xf32, #tpu.memory_space<vmem>>, vector<2x8x32xf32>
    tpu.vector_store %arg6[%c0_42, %c0_43, %c0_44], %143 {strides = array<i32>} : memref<2x8x32xf32, #tpu.memory_space<vmem>>, vector<2x8x32xf32>,
    return
  }
}

</mosaic_0001>

<llo_original>
// kernel: encoder_unit_block.1
$region0: #{encoder_unit_block.1}
  #allocation0 [shape = 'u32[]', space=smem, size = 0x4, offset = 0x4, fixed_abs, tag = 'smem constant byte address 0x4 - core index']
  #allocation1 [shape = 'u32[72,128]{1,0:T(1,128)}', space=vmem, size = 0x9000, scoped, tag = 'internal scratch']
  %s0 = inlined_call_operand.vmem [shape: f32[2,8,32], index: 0, kind: input, shape index: {}]
  %s1 = inlined_call_operand.vmem [shape: f32[8,32], index: 1, kind: input, shape index: {}]
  %s2 = inlined_call_operand.vmem [shape: f32[32,128], index: 2, kind: input, shape index: {}]
  %s3 = inlined_call_operand.vmem [shape: f32[32,128], index: 3, kind: input, shape index: {}]
  %s4 = inlined_call_operand.vmem [shape: f32[1,128], index: 4, kind: input, shape index: {}]
  %s5 = inlined_call_operand.vmem [shape: f32[128,32], index: 5, kind: input, shape index: {}]
  %s6 = inlined_call_operand.hbm [shape: f32[2,8,32], index: 6, kind: output, shape index: {}]
  %s7 = sld [smem:[#allocation0]]
  $region34: #{encoder_unit_block.1} parent=0
    _
  %s9 = ssub.s32 1, %s7
  %s10 = scalar_select 0, %s9, %s7
  $region1: #{encoder_unit_block.1} parent=0
    #allocation2 [shape = 'u8[8192]{0}', space=vmem, size = 0x2000, scoped, tag = 'output window, operand 0, single buffered']
    #allocation3 [shape = 's32[1]{0}', space=sflag, size = 0x4, scoped, tag = 'scoped memory for encoder_unit_block.1']
    %11 = vsyncpa [#allocation3], 0
    // Predicated region
    $region2: #{encoder_unit_block.1} parent=1 // pred_check
      _
    $region3: #{encoder_unit_block.1} parent=1 // pred_check_branch
      %13 = sbr.rel (0) target = $region5
    $region4: #{encoder_unit_block.1} parent=1 // pred_region
      _
    $region5: #{encoder_unit_block.1} parent=1 // pred_fallthru
      _
    // Predicated region
    $region6: #{encoder_unit_block.1} parent=1 // pred_check
      _
    $region7: #{encoder_unit_block.1} parent=1 // pred_check_branch
      %15 = sbr.rel (0) target = $region9
    $region8: #{encoder_unit_block.1} parent=1 // pred_region
      _
    $region9: #{encoder_unit_block.1} parent=1 // pred_fallthru
      _
    // Predicated region
    $region10: #{encoder_unit_block.1} parent=1 // pred_check
      _
    $region11: #{encoder_unit_block.1} parent=1 // pred_check_branch
      %17 = sbr.rel (0) target = $region13
    $region12: #{encoder_unit_block.1} parent=1 // pred_region
      _
    $region13: #{encoder_unit_block.1} parent=1 // pred_fallthru
      _
    // Predicated region
    $region14: #{encoder_unit_block.1} parent=1 // pred_check
      _
    $region15: #{encoder_unit_block.1} parent=1 // pred_check_branch
      %19 = sbr.rel (0) target = $region17
    $region16: #{encoder_unit_block.1} parent=1 // pred_region
      _
    $region17: #{encoder_unit_block.1} parent=1 // pred_fallthru
      _
    // Predicated region
    $region18: #{encoder_unit_block.1} parent=1 // pred_check
      _
    $region19: #{encoder_unit_block.1} parent=1 // pred_check_branch
      %21 = sbr.rel (0) target = $region21
    $region20: #{encoder_unit_block.1} parent=1 // pred_region
      _
    $region21: #{encoder_unit_block.1} parent=1 // pred_fallthru
      _
    // Predicated region
    $region22: #{encoder_unit_block.1} parent=1 // pred_check
      _
    $region23: #{encoder_unit_block.1} parent=1 // pred_check_branch
      %23 = sbr.rel (0) target = $region25
    $region24: #{encoder_unit_block.1} parent=1 // pred_region
      _
    $region25: #{encoder_unit_block.1} parent=1 // pred_fallthru
      _
    %v24 = vld [vmem:[%s0] sm:$0xff]
    %v25 = vld [vmem:[%s0 + $0x8] sm:$0xff]
    %v26 = vld [vmem:[%s1] sm:$0xff]
    %vm27 = vcmask 261120
    %v28 = vsel %vm27, %v24, 0.0
    %29 = vadd.xlane.f32.xlu0 %v28
    %v30 = vpop.xlane.xlu0 %29
    %v31 = vsel %vm27, %v25, 0.0
    %32 = vadd.xlane.f32.xlu0 %v31
    %v33 = vpop.xlane.xlu0 %32
    %v34 = vrcp.pop 32.0
    %v35 = vmul.f32 32.0, %v34
    %v36 = vsub.f32 1.0, %v35
    %v37 = vmul.f32 %v34, %v36
    %v38 = vadd.f32 %v34, %v37
    %vm39 = vweird.f32 %v34
    %v40 = vsel %vm39, %v34, %v38
    %v41 = vmul.f32 %v30, %v40
    %v42 = vmul.f32 %v33, %v40
    %v43 = vsub.f32 %v24, %v41
    %v44 = vsub.f32 %v25, %v42
    %v45 = vmul.f32 %v43, %v43
    %v46 = vmul.f32 %v44, %v44
    %v47 = vsel %vm27, %v45, 0.0
    %48 = vadd.xlane.f32.xlu0 %v47
    %v49 = vpop.xlane.xlu0 %48
    %v50 = vsel %vm27, %v46, 0.0
    %51 = vadd.xlane.f32.xlu0 %v50
    %v52 = vpop.xlane.xlu0 %51
    %v53 = vmul.f32 %v49, %v40
    %v54 = vmul.f32 %v52, %v40
    %v55 = vadd.f32 %v53, 1e-05
    %v56 = vadd.f32 %v54, 1e-05
    %v57 = vrsqrt.pop %v55
    %v58 = vmul.f32 %v57, %v55
    %v59 = vmul.f32 %v58, %v57
    %v60 = vmul.f32 0.5, %v59
    %v61 = vsub.f32 1.5, %v60
    %v62 = vmul.f32 %v57, %v61
    %vm63 = vweird.f32 %v55
    %vm64 = vweird.f32 %v57
    %vm65 = vmor %vm63, %vm64
    %v66 = vsel %vm65, %v57, %v62
    %v67 = vrsqrt.pop %v56
    %v68 = vmul.f32 %v67, %v56
    %v69 = vmul.f32 %v68, %v67
    %v70 = vmul.f32 0.5, %v69
    %v71 = vsub.f32 1.5, %v70
    %v72 = vmul.f32 %v67, %v71
    %vm73 = vweird.f32 %v56
    %vm74 = vweird.f32 %v67
    %vm75 = vmor %vm73, %vm74
    %v76 = vsel %vm75, %v67, %v72
    %v77 = vmul.f32 %v43, %v66
    %v78 = vmul.f32 %v44, %v76
    %v79 = vperm.slane %v26, 0
    %v80 = vmul.f32 %v77, %v79
    %v81 = vmul.f32 %v78, %v79
    %v82 = vperm.slane %v26, 1
    %v83 = vadd.f32 %v80, %v82
    %v84 = vadd.f32 %v81, %v82
    %v85 = vld [vmem:[%s2] sm:$0xff]
    %v86 = vld [vmem:[%s2 + $0x8] sm:$0xff]
    %v87 = vld [vmem:[%s2 + $0x10] sm:$0xff]
    %v88 = vld [vmem:[%s2 + $0x18] sm:$0xff]
    %v90 = vsel %vm27, %v83, 0
    %v93 = vsel %vm27, %v84, 0
    %95 = vmatpush.msra.mxu0 0.0
    %96 = vmatpush.msra.mxu0 0.0
    %97 = vmatpush.msra.mxu0 0.0
    %98 = vmatpush.msra.mxu0 0.0
    %99 = vmatpush.msra.mxu0 0.0
    %100 = vmatpush.msra.mxu0 0.0
    %101 = vmatpush.msra.mxu0 0.0
    %102 = vmatpush.msra.mxu0 0.0
    %103 = vmatpush.msra.mxu0 0.0
    %104 = vmatpush.msra.mxu0 0.0
    %105 = vmatpush.msra.mxu0 0.0
    %106 = vmatpush.msra.mxu0 0.0
    %107 = vmatpush.msra.mxu0 %v88
    %108 = vmatpush.msra.mxu0 %v87
    %109 = vmatpush.msra.mxu0 %v86
    %110 = vmatpush.msra.mxu0 %v85
    %111 = vmatmul.f32.gmra.mxu0 %v90
    %v112 = vpop.f32.mrf.mxu0
    %v113 = vadd.f32 0.0, %v112
    %114 = vmatmul.f32.gmra.mxu0 %v93
    %v115 = vpop.f32.mrf.mxu0
    %v116 = vadd.f32 0.0, %v115
    %117 = vdwg.mxu0
    %119 = vrot.lane.b32.xlu0 %v113, 96
    %v120 = vpop.permute.xlu0 %119
    %vm121 = vcmask 64512
    %v122 = vsel %vm121, %v113, 0
    %v124 = vsel %vm121, %v120, 0
    %126 = vmatpush.xpose.msra.mxu0 0.0
    %127 = vmatpush.xpose.msra.mxu0 0.0
    %128 = vmatpush.xpose.msra.mxu0 0.0
    %129 = vmatpush.xpose.msra.mxu0 0.0
    %130 = vmatpush.xpose.msra.mxu0 0.0
    %131 = vmatpush.xpose.msra.mxu0 0.0
    %132 = vmatpush.xpose.msra.mxu0 0.0
    %133 = vmatpush.xpose.msra.mxu0 0.0
    %134 = vmatpush.xpose.msra.mxu0 0.0
    %135 = vmatpush.xpose.msra.mxu0 0.0
    %136 = vmatpush.xpose.msra.mxu0 0.0
    %137 = vmatpush.xpose.msra.mxu0 0.0
    %138 = vmatpush.xpose.msra.mxu0 0.0
    %139 = vmatpush.xpose.msra.mxu0 0.0
    %140 = vmatpush.xpose.msra.mxu0 0.0
    %141 = vmatpush.xpose.msra.mxu0 %v124
    %142 = vmatmul.f32.gmra.mxu0 %v122
    %v143 = vpop.f32.mrf.mxu0
    %v144 = vadd.f32 0.0, %v143
    %145 = vdwg.mxu0
    %147 = vrot.lane.b32.xlu0 %v116, 96
    %v148 = vpop.permute.xlu0 %147
    %v149 = vsel %vm121, %v116, 0
    %v151 = vsel %vm121, %v148, 0
    %153 = vmatpush.xpose.msra.mxu0 0.0
    %154 = vmatpush.xpose.msra.mxu0 0.0
    %155 = vmatpush.xpose.msra.mxu0 0.0
    %156 = vmatpush.xpose.msra.mxu0 0.0
    %157 = vmatpush.xpose.msra.mxu0 0.0
    %158 = vmatpush.xpose.msra.mxu0 0.0
    %159 = vmatpush.xpose.msra.mxu0 0.0
    %160 = vmatpush.xpose.msra.mxu0 0.0
    %161 = vmatpush.xpose.msra.mxu0 0.0
    %162 = vmatpush.xpose.msra.mxu0 0.0
    %163 = vmatpush.xpose.msra.mxu0 0.0
    %164 = vmatpush.xpose.msra.mxu0 0.0
    %165 = vmatpush.xpose.msra.mxu0 0.0
    %166 = vmatpush.xpose.msra.mxu0 0.0
    %167 = vmatpush.xpose.msra.mxu0 0.0
    %168 = vmatpush.xpose.msra.mxu0 %v151
    %169 = vmatmul.f32.gmra.mxu0 %v149
    %v170 = vpop.f32.mrf.mxu0
    %v171 = vadd.f32 0.0, %v170
    %172 = vdwg.mxu0
    %v173 = vsel %vm121, %v144, -inf
    %174 = vmax.xlane.f32.xlu0 %v173
    %v175 = vpop.xlane.xlu0 %174
    %v176 = vsel %vm121, %v171, -inf
    %177 = vmax.xlane.f32.xlu0 %v176
    %v178 = vpop.xlane.xlu0 %177
    %v179 = vsub.f32 %v144, %v175
    %v180 = vsub.f32 %v171, %v178
    %v181 = vmul.f32 %v179, 1.442695
    %v182 = vpow.pop %v181
    %v183 = vmul.f32 %v180, 1.442695
    %v184 = vpow.pop %v183
    %v185 = vsel %vm121, %v182, 0.0
    %186 = vadd.xlane.f32.xlu0 %v185
    %v187 = vpop.xlane.xlu0 %186
    %v188 = vsel %vm121, %v184, 0.0
    %189 = vadd.xlane.f32.xlu0 %v188
    %v190 = vpop.xlane.xlu0 %189
    %191 = vrot.lane.b32.xlu0 %v113, 64
    %v192 = vpop.permute.xlu0 %191
    %v195 = vsel %vm121, %v182, 0
    %197 = vmatpush.msra.mxu0 0.0
    %198 = vmatpush.msra.mxu0 0.0
    %199 = vmatpush.msra.mxu0 0.0
    %200 = vmatpush.msra.mxu0 0.0
    %201 = vmatpush.msra.mxu0 0.0
    %202 = vmatpush.msra.mxu0 0.0
    %203 = vmatpush.msra.mxu0 0.0
    %204 = vmatpush.msra.mxu0 0.0
    %205 = vmatpush.msra.mxu0 0.0
    %206 = vmatpush.msra.mxu0 0.0
    %207 = vmatpush.msra.mxu0 0.0
    %208 = vmatpush.msra.mxu0 0.0
    %209 = vmatpush.msra.mxu0 0.0
    %210 = vmatpush.msra.mxu0 0.0
    %211 = vmatpush.msra.mxu0 0.0
    %212 = vmatpush.msra.mxu0 %v192
    %213 = vmatmul.f32.gmra.mxu0 %v195
    %v214 = vpop.f32.mrf.mxu0
    %v215 = vadd.f32 0.0, %v214
    %216 = vdwg.mxu0
    %217 = vrot.lane.b32.xlu0 %v116, 64
    %v218 = vpop.permute.xlu0 %217
    %v221 = vsel %vm121, %v184, 0
    %223 = vmatpush.msra.mxu0 0.0
    %224 = vmatpush.msra.mxu0 0.0
    %225 = vmatpush.msra.mxu0 0.0
    %226 = vmatpush.msra.mxu0 0.0
    %227 = vmatpush.msra.mxu0 0.0
    %228 = vmatpush.msra.mxu0 0.0
    %229 = vmatpush.msra.mxu0 0.0
    %230 = vmatpush.msra.mxu0 0.0
    %231 = vmatpush.msra.mxu0 0.0
    %232 = vmatpush.msra.mxu0 0.0
    %233 = vmatpush.msra.mxu0 0.0
    %234 = vmatpush.msra.mxu0 0.0
    %235 = vmatpush.msra.mxu0 0.0
    %236 = vmatpush.msra.mxu0 0.0
    %237 = vmatpush.msra.mxu0 0.0
    %238 = vmatpush.msra.mxu0 %v218
    %239 = vmatmul.f32.gmra.mxu0 %v221
    %v240 = vpop.f32.mrf.mxu0
    %v241 = vadd.f32 0.0, %v240
    %242 = vdwg.mxu0
    %v243 = vrcp.pop %v187
    %v244 = vmul.f32 %v187, %v243
    %v245 = vsub.f32 1.0, %v244
    %v246 = vmul.f32 %v243, %v245
    %v247 = vadd.f32 %v243, %v246
    %vm248 = vweird.f32 %v187
    %vm249 = vweird.f32 %v243
    %vm250 = vmor %vm248, %vm249
    %v251 = vsel %vm250, %v243, %v247
    %v252 = vand.u32 2147483647, %v187
    %vm253 = vcmp.eq.f32.partialorder %v252, 8.507059e+37
    %v254 = vand.u32 %v187, 2147483648
    %v255 = vor.u32 1.1754944e-38, %v254
    %v256 = vsel %vm253, %v255, %v251
    %v257 = vmul.f32 %v215, %v256
    %v258 = vrcp.pop %v190
    %v259 = vmul.f32 %v190, %v258
    %v260 = vsub.f32 1.0, %v259
    %v261 = vmul.f32 %v258, %v260
    %v262 = vadd.f32 %v258, %v261
    %vm263 = vweird.f32 %v190
    %vm264 = vweird.f32 %v258
    %vm265 = vmor %vm263, %vm264
    %v266 = vsel %vm265, %v258, %v262
    %v267 = vand.u32 2147483647, %v190
    %vm268 = vcmp.eq.f32.partialorder %v267, 8.507059e+37
    %v269 = vand.u32 %v190, 2147483648
    %v270 = vor.u32 1.1754944e-38, %v269
    %v271 = vsel %vm268, %v270, %v266
    %v272 = vmul.f32 %v241, %v271
    %273 = vrot.lane.b32.xlu0 %v113, 120
    %v274 = vpop.permute.xlu0 %273
    %275 = vrot.lane.b32.xlu0 %v113, 88
    %v276 = vpop.permute.xlu0 %275
    %v277 = vsel %vm121, %v274, 0
    %v279 = vsel %vm121, %v276, 0
    %281 = vmatpush.xpose.msra.mxu0 0.0
    %282 = vmatpush.xpose.msra.mxu0 0.0
    %283 = vmatpush.xpose.msra.mxu0 0.0
    %284 = vmatpush.xpose.msra.mxu0 0.0
    %285 = vmatpush.xpose.msra.mxu0 0.0
    %286 = vmatpush.xpose.msra.mxu0 0.0
    %287 = vmatpush.xpose.msra.mxu0 0.0
    %288 = vmatpush.xpose.msra.mxu0 0.0
    %289 = vmatpush.xpose.msra.mxu0 0.0
    %290 = vmatpush.xpose.msra.mxu0 0.0
    %291 = vmatpush.xpose.msra.mxu0 0.0
    %292 = vmatpush.xpose.msra.mxu0 0.0
    %293 = vmatpush.xpose.msra.mxu0 0.0
    %294 = vmatpush.xpose.msra.mxu0 0.0
    %295 = vmatpush.xpose.msra.mxu0 0.0
    %296 = vmatpush.xpose.msra.mxu0 %v279
    %297 = vmatmul.f32.gmra.mxu0 %v277
    %v298 = vpop.f32.mrf.mxu0
    %v299 = vadd.f32 0.0, %v298
    %300 = vdwg.mxu0
    %301 = vrot.lane.b32.xlu0 %v116, 120
    %v302 = vpop.permute.xlu0 %301
    %303 = vrot.lane.b32.xlu0 %v116, 88
    %v304 = vpop.permute.xlu0 %303
    %v305 = vsel %vm121, %v302, 0
    %v307 = vsel %vm121, %v304, 0
    %309 = vmatpush.xpose.msra.mxu0 0.0
    %310 = vmatpush.xpose.msra.mxu0 0.0
    %311 = vmatpush.xpose.msra.mxu0 0.0
    %312 = vmatpush.xpose.msra.mxu0 0.0
    %313 = vmatpush.xpose.msra.mxu0 0.0
    %314 = vmatpush.xpose.msra.mxu0 0.0
    %315 = vmatpush.xpose.msra.mxu0 0.0
    %316 = vmatpush.xpose.msra.mxu0 0.0
    %317 = vmatpush.xpose.msra.mxu0 0.0
    %318 = vmatpush.xpose.msra.mxu0 0.0
    %319 = vmatpush.xpose.msra.mxu0 0.0
    %320 = vmatpush.xpose.msra.mxu0 0.0
    %321 = vmatpush.xpose.msra.mxu0 0.0
    %322 = vmatpush.xpose.msra.mxu0 0.0
    %323 = vmatpush.xpose.msra.mxu0 0.0
    %324 = vmatpush.xpose.msra.mxu0 %v307
    %325 = vmatmul.f32.gmra.mxu0 %v305
    %v326 = vpop.f32.mrf.mxu0
    %v327 = vadd.f32 0.0, %v326
    %328 = vdwg.mxu0
    %v329 = vsel %vm121, %v299, -inf
    %330 = vmax.xlane.f32.xlu0 %v329
    %v331 = vpop.xlane.xlu0 %330
    %v332 = vsel %vm121, %v327, -inf
    %333 = vmax.xlane.f32.xlu0 %v332
    %v334 = vpop.xlane.xlu0 %333
    %v335 = vsub.f32 %v299, %v331
    %v336 = vsub.f32 %v327, %v334
    %v337 = vmul.f32 %v335, 1.442695
    %v338 = vpow.pop %v337
    %v339 = vmul.f32 %v336, 1.442695
    %v340 = vpow.pop %v339
    %v341 = vsel %vm121, %v338, 0.0
    %342 = vadd.xlane.f32.xlu0 %v341
    %v343 = vpop.xlane.xlu0 %342
    %v344 = vsel %vm121, %v340, 0.0
    %345 = vadd.xlane.f32.xlu0 %v344
    %v346 = vpop.xlane.xlu0 %345
    %347 = vrot.lane.b32.xlu0 %v113, 56
    %v348 = vpop.permute.xlu0 %347
    %v351 = vsel %vm121, %v338, 0
    %353 = vmatpush.msra.mxu0 0.0
    %354 = vmatpush.msra.mxu0 0.0
    %355 = vmatpush.msra.mxu0 0.0
    %356 = vmatpush.msra.mxu0 0.0
    %357 = vmatpush.msra.mxu0 0.0
    %358 = vmatpush.msra.mxu0 0.0
    %359 = vmatpush.msra.mxu0 0.0
    %360 = vmatpush.msra.mxu0 0.0
    %361 = vmatpush.msra.mxu0 0.0
    %362 = vmatpush.msra.mxu0 0.0
    %363 = vmatpush.msra.mxu0 0.0
    %364 = vmatpush.msra.mxu0 0.0
    %365 = vmatpush.msra.mxu0 0.0
    %366 = vmatpush.msra.mxu0 0.0
    %367 = vmatpush.msra.mxu0 0.0
    %368 = vmatpush.msra.mxu0 %v348
    %369 = vmatmul.f32.gmra.mxu0 %v351
    %v370 = vpop.f32.mrf.mxu0
    %v371 = vadd.f32 0.0, %v370
    %372 = vdwg.mxu0
    %373 = vrot.lane.b32.xlu0 %v116, 56
    %v374 = vpop.permute.xlu0 %373
    %v377 = vsel %vm121, %v340, 0
    %379 = vmatpush.msra.mxu0 0.0
    %380 = vmatpush.msra.mxu0 0.0
    %381 = vmatpush.msra.mxu0 0.0
    %382 = vmatpush.msra.mxu0 0.0
    %383 = vmatpush.msra.mxu0 0.0
    %384 = vmatpush.msra.mxu0 0.0
    %385 = vmatpush.msra.mxu0 0.0
    %386 = vmatpush.msra.mxu0 0.0
    %387 = vmatpush.msra.mxu0 0.0
    %388 = vmatpush.msra.mxu0 0.0
    %389 = vmatpush.msra.mxu0 0.0
    %390 = vmatpush.msra.mxu0 0.0
    %391 = vmatpush.msra.mxu0 0.0
    %392 = vmatpush.msra.mxu0 0.0
    %393 = vmatpush.msra.mxu0 0.0
    %394 = vmatpush.msra.mxu0 %v374
    %395 = vmatmul.f32.gmra.mxu0 %v377
    %v396 = vpop.f32.mrf.mxu0
    %v397 = vadd.f32 0.0, %v396
    %398 = vdwg.mxu0
    %v399 = vrcp.pop %v343
    %v400 = vmul.f32 %v343, %v399
    %v401 = vsub.f32 1.0, %v400
    %v402 = vmul.f32 %v399, %v401
    %v403 = vadd.f32 %v399, %v402
    %vm404 = vweird.f32 %v343
    %vm405 = vweird.f32 %v399
    %vm406 = vmor %vm404, %vm405
    %v407 = vsel %vm406, %v399, %v403
    %v408 = vand.u32 2147483647, %v343
    %vm409 = vcmp.eq.f32.partialorder %v408, 8.507059e+37
    %v410 = vand.u32 %v343, 2147483648
    %v411 = vor.u32 1.1754944e-38, %v410
    %v412 = vsel %vm409, %v411, %v407
    %v413 = vmul.f32 %v371, %v412
    %v414 = vrcp.pop %v346
    %v415 = vmul.f32 %v346, %v414
    %v416 = vsub.f32 1.0, %v415
    %v417 = vmul.f32 %v414, %v416
    %v418 = vadd.f32 %v414, %v417
    %vm419 = vweird.f32 %v346
    %vm420 = vweird.f32 %v414
    %vm421 = vmor %vm419, %vm420
    %v422 = vsel %vm421, %v414, %v418
    %v423 = vand.u32 2147483647, %v346
    %vm424 = vcmp.eq.f32.partialorder %v423, 8.507059e+37
    %v425 = vand.u32 %v346, 2147483648
    %v426 = vor.u32 1.1754944e-38, %v425
    %v427 = vsel %vm424, %v426, %v422
    %v428 = vmul.f32 %v397, %v427
    %429 = vrot.lane.b32.xlu0 %v113, 112
    %v430 = vpop.permute.xlu0 %429
    %431 = vrot.lane.b32.xlu0 %v113, 80
    %v432 = vpop.permute.xlu0 %431
    %v433 = vsel %vm121, %v430, 0
    %v435 = vsel %vm121, %v432, 0
    %437 = vmatpush.xpose.msra.mxu0 0.0
    %438 = vmatpush.xpose.msra.mxu0 0.0
    %439 = vmatpush.xpose.msra.mxu0 0.0
    %440 = vmatpush.xpose.msra.mxu0 0.0
    %441 = vmatpush.xpose.msra.mxu0 0.0
    %442 = vmatpush.xpose.msra.mxu0 0.0
    %443 = vmatpush.xpose.msra.mxu0 0.0
    %444 = vmatpush.xpose.msra.mxu0 0.0
    %445 = vmatpush.xpose.msra.mxu0 0.0
    %446 = vmatpush.xpose.msra.mxu0 0.0
    %447 = vmatpush.xpose.msra.mxu0 0.0
    %448 = vmatpush.xpose.msra.mxu0 0.0
    %449 = vmatpush.xpose.msra.mxu0 0.0
    %450 = vmatpush.xpose.msra.mxu0 0.0
    %451 = vmatpush.xpose.msra.mxu0 0.0
    %452 = vmatpush.xpose.msra.mxu0 %v435
    %453 = vmatmul.f32.gmra.mxu0 %v433
    %v454 = vpop.f32.mrf.mxu0
    %v455 = vadd.f32 0.0, %v454
    %456 = vdwg.mxu0
    %457 = vrot.lane.b32.xlu0 %v116, 112
    %v458 = vpop.permute.xlu0 %457
    %459 = vrot.lane.b32.xlu0 %v116, 80
    %v460 = vpop.permute.xlu0 %459
    %v461 = vsel %vm121, %v458, 0
    %v463 = vsel %vm121, %v460, 0
    %465 = vmatpush.xpose.msra.mxu0 0.0
    %466 = vmatpush.xpose.msra.mxu0 0.0
    %467 = vmatpush.xpose.msra.mxu0 0.0
    %468 = vmatpush.xpose.msra.mxu0 0.0
    %469 = vmatpush.xpose.msra.mxu0 0.0
    %470 = vmatpush.xpose.msra.mxu0 0.0
    %471 = vmatpush.xpose.msra.mxu0 0.0
    %472 = vmatpush.xpose.msra.mxu0 0.0
    %473 = vmatpush.xpose.msra.mxu0 0.0
    %474 = vmatpush.xpose.msra.mxu0 0.0
    %475 = vmatpush.xpose.msra.mxu0 0.0
    %476 = vmatpush.xpose.msra.mxu0 0.0
    %477 = vmatpush.xpose.msra.mxu0 0.0
    %478 = vmatpush.xpose.msra.mxu0 0.0
    %479 = vmatpush.xpose.msra.mxu0 0.0
    %480 = vmatpush.xpose.msra.mxu0 %v463
    %481 = vmatmul.f32.gmra.mxu0 %v461
    %v482 = vpop.f32.mrf.mxu0
    %v483 = vadd.f32 0.0, %v482
    %484 = vdwg.mxu0
    %v485 = vsel %vm121, %v455, -inf
    %486 = vmax.xlane.f32.xlu0 %v485
    %v487 = vpop.xlane.xlu0 %486
    %v488 = vsel %vm121, %v483, -inf
    %489 = vmax.xlane.f32.xlu0 %v488
    %v490 = vpop.xlane.xlu0 %489
    %v491 = vsub.f32 %v455, %v487
    %v492 = vsub.f32 %v483, %v490
    %v493 = vmul.f32 %v491, 1.442695
    %v494 = vpow.pop %v493
    %v495 = vmul.f32 %v492, 1.442695
    %v496 = vpow.pop %v495
    %v497 = vsel %vm121, %v494, 0.0
    %498 = vadd.xlane.f32.xlu0 %v497
    %v499 = vpop.xlane.xlu0 %498
    %v500 = vsel %vm121, %v496, 0.0
    %501 = vadd.xlane.f32.xlu0 %v500
    %v502 = vpop.xlane.xlu0 %501
    %503 = vrot.lane.b32.xlu0 %v113, 48
    %v504 = vpop.permute.xlu0 %503
    %v507 = vsel %vm121, %v494, 0
    %509 = vmatpush.msra.mxu0 0.0
    %510 = vmatpush.msra.mxu0 0.0
    %511 = vmatpush.msra.mxu0 0.0
    %512 = vmatpush.msra.mxu0 0.0
    %513 = vmatpush.msra.mxu0 0.0
    %514 = vmatpush.msra.mxu0 0.0
    %515 = vmatpush.msra.mxu0 0.0
    %516 = vmatpush.msra.mxu0 0.0
    %517 = vmatpush.msra.mxu0 0.0
    %518 = vmatpush.msra.mxu0 0.0
    %519 = vmatpush.msra.mxu0 0.0
    %520 = vmatpush.msra.mxu0 0.0
    %521 = vmatpush.msra.mxu0 0.0
    %522 = vmatpush.msra.mxu0 0.0
    %523 = vmatpush.msra.mxu0 0.0
    %524 = vmatpush.msra.mxu0 %v504
    %525 = vmatmul.f32.gmra.mxu0 %v507
    %v526 = vpop.f32.mrf.mxu0
    %v527 = vadd.f32 0.0, %v526
    %528 = vdwg.mxu0
    %529 = vrot.lane.b32.xlu0 %v116, 48
    %v530 = vpop.permute.xlu0 %529
    %v533 = vsel %vm121, %v496, 0
    %535 = vmatpush.msra.mxu0 0.0
    %536 = vmatpush.msra.mxu0 0.0
    %537 = vmatpush.msra.mxu0 0.0
    %538 = vmatpush.msra.mxu0 0.0
    %539 = vmatpush.msra.mxu0 0.0
    %540 = vmatpush.msra.mxu0 0.0
    %541 = vmatpush.msra.mxu0 0.0
    %542 = vmatpush.msra.mxu0 0.0
    %543 = vmatpush.msra.mxu0 0.0
    %544 = vmatpush.msra.mxu0 0.0
    %545 = vmatpush.msra.mxu0 0.0
    %546 = vmatpush.msra.mxu0 0.0
    %547 = vmatpush.msra.mxu0 0.0
    %548 = vmatpush.msra.mxu0 0.0
    %549 = vmatpush.msra.mxu0 0.0
    %550 = vmatpush.msra.mxu0 %v530
    %551 = vmatmul.f32.gmra.mxu0 %v533
    %v552 = vpop.f32.mrf.mxu0
    %v553 = vadd.f32 0.0, %v552
    %554 = vdwg.mxu0
    %v555 = vrcp.pop %v499
    %v556 = vmul.f32 %v499, %v555
    %v557 = vsub.f32 1.0, %v556
    %v558 = vmul.f32 %v555, %v557
    %v559 = vadd.f32 %v555, %v558
    %vm560 = vweird.f32 %v499
    %vm561 = vweird.f32 %v555
    %vm562 = vmor %vm560, %vm561
    %v563 = vsel %vm562, %v555, %v559
    %v564 = vand.u32 2147483647, %v499
    %vm565 = vcmp.eq.f32.partialorder %v564, 8.507059e+37
    %v566 = vand.u32 %v499, 2147483648
    %v567 = vor.u32 1.1754944e-38, %v566
    %v568 = vsel %vm565, %v567, %v563
    %v569 = vmul.f32 %v527, %v568
    %v570 = vrcp.pop %v502
    %v571 = vmul.f32 %v502, %v570
    %v572 = vsub.f32 1.0, %v571
    %v573 = vmul.f32 %v570, %v572
    %v574 = vadd.f32 %v570, %v573
    %vm575 = vweird.f32 %v502
    %vm576 = vweird.f32 %v570
    %vm577 = vmor %vm575, %vm576
    %v578 = vsel %vm577, %v570, %v574
    %v579 = vand.u32 2147483647, %v502
    %vm580 = vcmp.eq.f32.partialorder %v579, 8.507059e+37
    %v581 = vand.u32 %v502, 2147483648
    %v582 = vor.u32 1.1754944e-38, %v581
    %v583 = vsel %vm580, %v582, %v578
    %v584 = vmul.f32 %v553, %v583
    %585 = vrot.lane.b32.xlu0 %v113, 104
    %v586 = vpop.permute.xlu0 %585
    %587 = vrot.lane.b32.xlu0 %v113, 72
    %v588 = vpop.permute.xlu0 %587
    %v589 = vsel %vm121, %v586, 0
    %v591 = vsel %vm121, %v588, 0
    %593 = vmatpush.xpose.msra.mxu0 0.0
    %594 = vmatpush.xpose.msra.mxu0 0.0
    %595 = vmatpush.xpose.msra.mxu0 0.0
    %596 = vmatpush.xpose.msra.mxu0 0.0
    %597 = vmatpush.xpose.msra.mxu0 0.0
    %598 = vmatpush.xpose.msra.mxu0 0.0
    %599 = vmatpush.xpose.msra.mxu0 0.0
    %600 = vmatpush.xpose.msra.mxu0 0.0
    %601 = vmatpush.xpose.msra.mxu0 0.0
    %602 = vmatpush.xpose.msra.mxu0 0.0
    %603 = vmatpush.xpose.msra.mxu0 0.0
    %604 = vmatpush.xpose.msra.mxu0 0.0
    %605 = vmatpush.xpose.msra.mxu0 0.0
    %606 = vmatpush.xpose.msra.mxu0 0.0
    %607 = vmatpush.xpose.msra.mxu0 0.0
    %608 = vmatpush.xpose.msra.mxu0 %v591
    %609 = vmatmul.f32.gmra.mxu0 %v589
    %v610 = vpop.f32.mrf.mxu0
    %v611 = vadd.f32 0.0, %v610
    %612 = vdwg.mxu0
    %613 = vrot.lane.b32.xlu0 %v116, 104
    %v614 = vpop.permute.xlu0 %613
    %615 = vrot.lane.b32.xlu0 %v116, 72
    %v616 = vpop.permute.xlu0 %615
    %v617 = vsel %vm121, %v614, 0
    %v619 = vsel %vm121, %v616, 0
    %621 = vmatpush.xpose.msra.mxu0 0.0
    %622 = vmatpush.xpose.msra.mxu0 0.0
    %623 = vmatpush.xpose.msra.mxu0 0.0
    %624 = vmatpush.xpose.msra.mxu0 0.0
    %625 = vmatpush.xpose.msra.mxu0 0.0
    %626 = vmatpush.xpose.msra.mxu0 0.0
    %627 = vmatpush.xpose.msra.mxu0 0.0
    %628 = vmatpush.xpose.msra.mxu0 0.0
    %629 = vmatpush.xpose.msra.mxu0 0.0
    %630 = vmatpush.xpose.msra.mxu0 0.0
    %631 = vmatpush.xpose.msra.mxu0 0.0
    %632 = vmatpush.xpose.msra.mxu0 0.0
    %633 = vmatpush.xpose.msra.mxu0 0.0
    %634 = vmatpush.xpose.msra.mxu0 0.0
    %635 = vmatpush.xpose.msra.mxu0 0.0
    %636 = vmatpush.xpose.msra.mxu0 %v619
    %637 = vmatmul.f32.gmra.mxu0 %v617
    %v638 = vpop.f32.mrf.mxu0
    %v639 = vadd.f32 0.0, %v638
    %640 = vdwg.mxu0
    %v641 = vsel %vm121, %v611, -inf
    %642 = vmax.xlane.f32.xlu0 %v641
    %v643 = vpop.xlane.xlu0 %642
    %v644 = vsel %vm121, %v639, -inf
    %645 = vmax.xlane.f32.xlu0 %v644
    %v646 = vpop.xlane.xlu0 %645
    %v647 = vsub.f32 %v611, %v643
    %v648 = vsub.f32 %v639, %v646
    %v649 = vmul.f32 %v647, 1.442695
    %v650 = vpow.pop %v649
    %v651 = vmul.f32 %v648, 1.442695
    %v652 = vpow.pop %v651
    %v653 = vsel %vm121, %v650, 0.0
    %654 = vadd.xlane.f32.xlu0 %v653
    %v655 = vpop.xlane.xlu0 %654
    %v656 = vsel %vm121, %v652, 0.0
    %657 = vadd.xlane.f32.xlu0 %v656
    %v658 = vpop.xlane.xlu0 %657
    %659 = vrot.lane.b32.xlu0 %v113, 40
    %v660 = vpop.permute.xlu0 %659
    %v663 = vsel %vm121, %v650, 0
    %665 = vmatpush.msra.mxu0 0.0
    %666 = vmatpush.msra.mxu0 0.0
    %667 = vmatpush.msra.mxu0 0.0
    %668 = vmatpush.msra.mxu0 0.0
    %669 = vmatpush.msra.mxu0 0.0
    %670 = vmatpush.msra.mxu0 0.0
    %671 = vmatpush.msra.mxu0 0.0
    %672 = vmatpush.msra.mxu0 0.0
    %673 = vmatpush.msra.mxu0 0.0
    %674 = vmatpush.msra.mxu0 0.0
    %675 = vmatpush.msra.mxu0 0.0
    %676 = vmatpush.msra.mxu0 0.0
    %677 = vmatpush.msra.mxu0 0.0
    %678 = vmatpush.msra.mxu0 0.0
    %679 = vmatpush.msra.mxu0 0.0
    %680 = vmatpush.msra.mxu0 %v660
    %681 = vmatmul.f32.gmra.mxu0 %v663
    %v682 = vpop.f32.mrf.mxu0
    %v683 = vadd.f32 0.0, %v682
    %684 = vdwg.mxu0
    %685 = vrot.lane.b32.xlu0 %v116, 40
    %v686 = vpop.permute.xlu0 %685
    %v689 = vsel %vm121, %v652, 0
    %691 = vmatpush.msra.mxu0 0.0
    %692 = vmatpush.msra.mxu0 0.0
    %693 = vmatpush.msra.mxu0 0.0
    %694 = vmatpush.msra.mxu0 0.0
    %695 = vmatpush.msra.mxu0 0.0
    %696 = vmatpush.msra.mxu0 0.0
    %697 = vmatpush.msra.mxu0 0.0
    %698 = vmatpush.msra.mxu0 0.0
    %699 = vmatpush.msra.mxu0 0.0
    %700 = vmatpush.msra.mxu0 0.0
    %701 = vmatpush.msra.mxu0 0.0
    %702 = vmatpush.msra.mxu0 0.0
    %703 = vmatpush.msra.mxu0 0.0
    %704 = vmatpush.msra.mxu0 0.0
    %705 = vmatpush.msra.mxu0 0.0
    %706 = vmatpush.msra.mxu0 %v686
    %707 = vmatmul.f32.gmra.mxu0 %v689
    %v708 = vpop.f32.mrf.mxu0
    %v709 = vadd.f32 0.0, %v708
    %710 = vdwg.mxu0
    %v711 = vrcp.pop %v655
    %v712 = vmul.f32 %v655, %v711
    %v713 = vsub.f32 1.0, %v712
    %v714 = vmul.f32 %v711, %v713
    %v715 = vadd.f32 %v711, %v714
    %vm716 = vweird.f32 %v655
    %vm717 = vweird.f32 %v711
    %vm718 = vmor %vm716, %vm717
    %v719 = vsel %vm718, %v711, %v715
    %v720 = vand.u32 2147483647, %v655
    %vm721 = vcmp.eq.f32.partialorder %v720, 8.507059e+37
    %v722 = vand.u32 %v655, 2147483648
    %v723 = vor.u32 1.1754944e-38, %v722
    %v724 = vsel %vm721, %v723, %v719
    %v725 = vmul.f32 %v683, %v724
    %v726 = vrcp.pop %v658
    %v727 = vmul.f32 %v658, %v726
    %v728 = vsub.f32 1.0, %v727
    %v729 = vmul.f32 %v726, %v728
    %v730 = vadd.f32 %v726, %v729
    %vm731 = vweird.f32 %v658
    %vm732 = vweird.f32 %v726
    %vm733 = vmor %vm731, %vm732
    %v734 = vsel %vm733, %v726, %v730
    %v735 = vand.u32 2147483647, %v658
    %vm736 = vcmp.eq.f32.partialorder %v735, 8.507059e+37
    %v737 = vand.u32 %v658, 2147483648
    %v738 = vor.u32 1.1754944e-38, %v737
    %v739 = vsel %vm736, %v738, %v734
    %v740 = vmul.f32 %v709, %v739
    %743 = vrot.lane.b32.xlu0 %v413, 8
    %v744 = vpop.permute.xlu0 %743
    %745 = vrot.lane.b32.xlu0 %v428, 8
    %v746 = vpop.permute.xlu0 %745
    %751 = vrot.lane.b32.xlu0 %v569, 16
    %v752 = vpop.permute.xlu0 %751
    %753 = vrot.lane.b32.xlu0 %v584, 16
    %v754 = vpop.permute.xlu0 %753
    %759 = vrot.lane.b32.xlu0 %v725, 24
    %v760 = vpop.permute.xlu0 %759
    %761 = vrot.lane.b32.xlu0 %v740, 24
    %v762 = vpop.permute.xlu0 %761
    %v765 = vsel %vm121, %v257, %v744
    %v766 = vsel %vm121, %v272, %v746
    %vm767 = vcmask 130048
    %v768 = vsel %vm767, %v765, %v752
    %v769 = vsel %vm767, %v766, %v754
    %vm770 = vcmask 195584
    %v771 = vsel %vm770, %v768, %v760
    %v772 = vsel %vm770, %v769, %v762
    %777 = vrot.lane.b32.xlu0 %v85, 32
    %v778 = vpop.permute.xlu0 %777
    %779 = vrot.lane.b32.xlu0 %v86, 32
    %v780 = vpop.permute.xlu0 %779
    %781 = vrot.lane.b32.xlu0 %v87, 32
    %v782 = vpop.permute.xlu0 %781
    %783 = vrot.lane.b32.xlu0 %v88, 32
    %v784 = vpop.permute.xlu0 %783
    %v790 = vsel %vm27, %v771, 0
    %v793 = vsel %vm27, %v772, 0
    %795 = vmatpush.msra.mxu0 0.0
    %796 = vmatpush.msra.mxu0 0.0
    %797 = vmatpush.msra.mxu0 0.0
    %798 = vmatpush.msra.mxu0 0.0
    %799 = vmatpush.msra.mxu0 0.0
    %800 = vmatpush.msra.mxu0 0.0
    %801 = vmatpush.msra.mxu0 0.0
    %802 = vmatpush.msra.mxu0 0.0
    %803 = vmatpush.msra.mxu0 0.0
    %804 = vmatpush.msra.mxu0 0.0
    %805 = vmatpush.msra.mxu0 0.0
    %806 = vmatpush.msra.mxu0 0.0
    %807 = vmatpush.msra.mxu0 %v784
    %808 = vmatpush.msra.mxu0 %v782
    %809 = vmatpush.msra.mxu0 %v780
    %810 = vmatpush.msra.mxu0 %v778
    %811 = vmatmul.f32.gmra.mxu0 %v790
    %v812 = vpop.f32.mrf.mxu0
    %v813 = vadd.f32 0.0, %v812
    %814 = vmatmul.f32.gmra.mxu0 %v793
    %v815 = vpop.f32.mrf.mxu0
    %v816 = vadd.f32 0.0, %v815
    %817 = vdwg.mxu0
    %v818 = vadd.f32 %v24, %v813
    %v819 = vadd.f32 %v25, %v816
    %v820 = vsel %vm27, %v818, 0.0
    %821 = vadd.xlane.f32.xlu0 %v820
    %v822 = vpop.xlane.xlu0 %821
    %v823 = vsel %vm27, %v819, 0.0
    %824 = vadd.xlane.f32.xlu0 %v823
    %v825 = vpop.xlane.xlu0 %824
    %v826 = vmul.f32 %v822, %v40
    %v827 = vmul.f32 %v825, %v40
    %v828 = vsub.f32 %v818, %v826
    %v829 = vsub.f32 %v819, %v827
    %v830 = vmul.f32 %v828, %v828
    %v831 = vmul.f32 %v829, %v829
    %v832 = vsel %vm27, %v830, 0.0
    %833 = vadd.xlane.f32.xlu0 %v832
    %v834 = vpop.xlane.xlu0 %833
    %v835 = vsel %vm27, %v831, 0.0
    %836 = vadd.xlane.f32.xlu0 %v835
    %v837 = vpop.xlane.xlu0 %836
    %v838 = vmul.f32 %v834, %v40
    %v839 = vmul.f32 %v837, %v40
    %v840 = vadd.f32 %v838, 1e-05
    %v841 = vadd.f32 %v839, 1e-05
    %v842 = vrsqrt.pop %v840
    %v843 = vmul.f32 %v842, %v840
    %v844 = vmul.f32 %v843, %v842
    %v845 = vmul.f32 0.5, %v844
    %v846 = vsub.f32 1.5, %v845
    %v847 = vmul.f32 %v842, %v846
    %vm848 = vweird.f32 %v840
    %vm849 = vweird.f32 %v842
    %vm850 = vmor %vm848, %vm849
    %v851 = vsel %vm850, %v842, %v847
    %v852 = vrsqrt.pop %v841
    %v853 = vmul.f32 %v852, %v841
    %v854 = vmul.f32 %v853, %v852
    %v855 = vmul.f32 0.5, %v854
    %v856 = vsub.f32 1.5, %v855
    %v857 = vmul.f32 %v852, %v856
    %vm858 = vweird.f32 %v841
    %vm859 = vweird.f32 %v852
    %vm860 = vmor %vm858, %vm859
    %v861 = vsel %vm860, %v852, %v857
    %v862 = vmul.f32 %v828, %v851
    %v863 = vmul.f32 %v829, %v861
    %v864 = vperm.slane %v26, 2
    %v865 = vmul.f32 %v862, %v864
    %v866 = vmul.f32 %v863, %v864
    %v867 = vperm.slane %v26, 3
    %v868 = vadd.f32 %v865, %v867
    %v869 = vadd.f32 %v866, %v867
    %v870 = vld [vmem:[%s3] sm:$0xff]
    %v871 = vld [vmem:[%s3 + $0x8] sm:$0xff]
    %v872 = vld [vmem:[%s3 + $0x10] sm:$0xff]
    %v873 = vld [vmem:[%s3 + $0x18] sm:$0xff]
    %v874 = vld [vmem:[%s4] sm:$0x1]
    %v876 = vperm.slane %v874, 0
    %v879 = vsel %vm27, %v868, 0
    %v882 = vsel %vm27, %v869, 0
    %884 = vmatpush.msra.mxu0 0.0
    %885 = vmatpush.msra.mxu0 0.0
    %886 = vmatpush.msra.mxu0 0.0
    %887 = vmatpush.msra.mxu0 0.0
    %888 = vmatpush.msra.mxu0 0.0
    %889 = vmatpush.msra.mxu0 0.0
    %890 = vmatpush.msra.mxu0 0.0
    %891 = vmatpush.msra.mxu0 0.0
    %892 = vmatpush.msra.mxu0 0.0
    %893 = vmatpush.msra.mxu0 0.0
    %894 = vmatpush.msra.mxu0 0.0
    %895 = vmatpush.msra.mxu0 0.0
    %896 = vmatpush.msra.mxu0 %v873
    %897 = vmatpush.msra.mxu0 %v872
    %898 = vmatpush.msra.mxu0 %v871
    %899 = vmatpush.msra.mxu0 %v870
    %900 = vmatmul.f32.gmra.mxu0 %v879
    %v901 = vpop.f32.mrf.mxu0
    %v902 = vadd.f32 %v876, %v901
    %903 = vmatmul.f32.gmra.mxu0 %v882
    %v904 = vpop.f32.mrf.mxu0
    %v905 = vadd.f32 %v876, %v904
    %906 = vdwg.mxu0
    %v907 = vmax.f32 %v902, 0.0
    %v908 = vmax.f32 %v905, 0.0
    %v909 = vld [vmem:[%s5] sm:$0xff]
    %v910 = vld [vmem:[%s5 + $0x8] sm:$0xff]
    %v911 = vld [vmem:[%s5 + $0x10] sm:$0xff]
    %v912 = vld [vmem:[%s5 + $0x18] sm:$0xff]
    %v913 = vld [vmem:[%s5 + $0x20] sm:$0xff]
    %v914 = vld [vmem:[%s5 + $0x28] sm:$0xff]
    %v915 = vld [vmem:[%s5 + $0x30] sm:$0xff]
    %v916 = vld [vmem:[%s5 + $0x38] sm:$0xff]
    %v917 = vld [vmem:[%s5 + $0x40] sm:$0xff]
    %v918 = vld [vmem:[%s5 + $0x48] sm:$0xff]
    %v919 = vld [vmem:[%s5 + $0x50] sm:$0xff]
    %v920 = vld [vmem:[%s5 + $0x58] sm:$0xff]
    %v921 = vld [vmem:[%s5 + $0x60] sm:$0xff]
    %v922 = vld [vmem:[%s5 + $0x68] sm:$0xff]
    %v923 = vld [vmem:[%s5 + $0x70] sm:$0xff]
    %v924 = vld [vmem:[%s5 + $0x78] sm:$0xff]
    %v925 = vperm.slane %v26, 4
    %926 = vmatpush.msra.mxu0 %v924
    %927 = vmatpush.msra.mxu0 %v923
    %928 = vmatpush.msra.mxu0 %v922
    %929 = vmatpush.msra.mxu0 %v921
    %930 = vmatpush.msra.mxu0 %v920
    %931 = vmatpush.msra.mxu0 %v919
    %932 = vmatpush.msra.mxu0 %v918
    %933 = vmatpush.msra.mxu0 %v917
    %934 = vmatpush.msra.mxu0 %v916
    %935 = vmatpush.msra.mxu0 %v915
    %936 = vmatpush.msra.mxu0 %v914
    %937 = vmatpush.msra.mxu0 %v913
    %938 = vmatpush.msra.mxu0 %v912
    %939 = vmatpush.msra.mxu0 %v911
    %940 = vmatpush.msra.mxu0 %v910
    %941 = vmatpush.msra.mxu0 %v909
    %942 = vmatmul.f32.gmra.mxu0 %v907
    %v943 = vpop.f32.mrf.mxu0
    %v944 = vadd.f32 %v925, %v943
    %945 = vmatmul.f32.gmra.mxu0 %v908
    %v946 = vpop.f32.mrf.mxu0
    %v947 = vadd.f32 %v925, %v946
    %948 = vdwg.mxu0
    %v949 = vadd.f32 %v818, %v944
    %v950 = vadd.f32 %v819, %v947
    %951 = vst.msk [vmem:[#allocation2] sm:$0xff] %vm27, %v949
    %952 = vst.msk [vmem:[#allocation2 + $0x8] sm:$0xff] %vm27, %v950
    // Predicated region
    $region26: #{encoder_unit_block.1} parent=1 // pred_check
      _
    $region27: #{encoder_unit_block.1} parent=1 // pred_check_branch
      %954 = sbr.rel (0) target = $region29
    $region28: #{encoder_unit_block.1} parent=1 // pred_region
      %956 = vsyncadd [#allocation3], 0
      %s957 = sshll.u32 [#allocation2], 4
      %s958 = int_to_ptr.vmem [resolvable:$true] %s957
      %s959 = sshll.u32 %s6, 4
      %s960 = int_to_ptr.hbm [resolvable:$true] %s959
      %965 = dma.vmem_to_hbm [thread:$0]  %s958, 256, %s960, [#allocation3], 128, 128, 8
    $region29: #{encoder_unit_block.1} parent=1 // pred_fallthru
      _
    // Predicated region
    $region30: #{encoder_unit_block.1} parent=1 // pred_check
      _
    $region31: #{encoder_unit_block.1} parent=1 // pred_check_branch
      %967 = sbr.rel (0) target = $region33
    $region32: #{encoder_unit_block.1} parent=1 // pred_region
      %969 = dma.done [#allocation3], 256
    $region33: #{encoder_unit_block.1} parent=1 // pred_fallthru
      _
    %970 = vsyncpa [#allocation3], 1

</llo_original>
